<compile_context>
chip_gen: v6e
topology: v6e:2x2x1
jax: 0.10.0
libtpu: 0.0.40
codegen_flags: <defaults>
</compile_context>

<pallas_src>
import jax
import jax.numpy as jnp
from jax.experimental import pallas as pl
from jax.experimental.pallas import tpu as pltpu

_H1, _H2, _H3 = 256, 128, 128
_LANE = 128  # pad n_actions up to a full lane width for dense stores


def _round_up(n, m):
    return (n + m - 1) // m * m


def _cdiv(a, b):
    return (a + b - 1) // b


def _mlp_kernel(x_ref,
                w1_ref, b1_ref,
                w2_ref, b2_ref,
                w3_ref, b3_ref,
                w4_ref, b4_ref,
                o_ref):
    # All matmuls take bf16 operands (native MXU rate) and accumulate in f32.
    # Bias-add + ReLU run on the f32 accumulator (no bf16 VPU on v5e).
    x = x_ref[...].astype(jnp.bfloat16)

    # Layer 1: (TB, n_obs) @ (n_obs, 256) + (1, 256) -> ReLU
    h = jnp.dot(x, w1_ref[...], preferred_element_type=jnp.float32)
    h = jnp.maximum(h + b1_ref[...], 0.0).astype(jnp.bfloat16)

    # Layer 2: (TB, 256) @ (256, 128) + (1, 128) -> ReLU
    h = jnp.dot(h, w2_ref[...], preferred_element_type=jnp.float32)
    h = jnp.maximum(h + b2_ref[...], 0.0).astype(jnp.bfloat16)

    # Layer 3: (TB, 128) @ (128, 128) + (1, 128) -> ReLU
    h = jnp.dot(h, w3_ref[...], preferred_element_type=jnp.float32)
    h = jnp.maximum(h + b3_ref[...], 0.0).astype(jnp.bfloat16)

    # Output layer: (TB, 128) @ (128, 128-padded) + (1, 128-padded)
    out = jnp.dot(h, w4_ref[...], preferred_element_type=jnp.float32)
    o_ref[...] = (out + b4_ref[...]).astype(o_ref.dtype)


def prepare_params(params):
    """One-time conversion of PyTorch-layout params to kernel layout.

    Weights (out, in) -> (in, out), cast to bf16 (f32 accumulation happens on
    the MXU).  Biases (out,) -> (1, out), kept f32 (added to the f32
    accumulator).  The output layer is zero-padded from n_actions to 128
    lanes so the kernel's final store is lane-dense.  Call ONCE outside the
    inference/training loop; the per-call forward does no weight copies.
    """
    n_actions = int(params["w4"].shape[0])
    a_pad = _round_up(max(n_actions, 1), _LANE)

    def wt(w):
        return jnp.asarray(w, jnp.float32).T.astype(jnp.bfloat16)

    def row(b):
        return jnp.asarray(b, jnp.float32).reshape(1, -1)

    w4 = jnp.asarray(params["w4"], jnp.float32).T   # (128, n_actions) f32
    b4 = row(params["b4"])                          # (1, n_actions)   f32
    if a_pad != n_actions:
        w4 = jnp.pad(w4, ((0, 0), (0, a_pad - n_actions)))
        b4 = jnp.pad(b4, ((0, 0), (0, a_pad - n_actions)))
    w4 = w4.astype(jnp.bfloat16)

    return {
        "w1": wt(params["w1"]), "b1": row(params["b1"]),
        "w2": wt(params["w2"]), "b2": row(params["b2"]),
        "w3": wt(params["w3"]), "b3": row(params["b3"]),
        "w4": w4, "b4": b4,
        "n_actions": n_actions,   # Python int (static)
    }


def spread_deep_network_forward(x, prepped, *, block_b=512,
                                out_dtype=jnp.float32):
    """Forward pass of SpreadDeepNetwork via a single Pallas call.

    x: (B, n_observations) float32
    prepped: output of prepare_params (kernel-layout weights, prepared once)
    out_dtype: dtype of the emitted Q values (pass jnp.bfloat16 on the acting
               path to halve output writeback).
    returns: (B, n_actions) in out_dtype
    """
    x = jnp.asarray(x, jnp.float32)
    B, n_obs = x.shape
    n_actions = prepped["n_actions"]
    a_pad = prepped["w4"].shape[1]

    # Balanced batch tiling: pick the number of tiles first, then the
    # smallest 8-aligned tile that covers B (<= 7 padded rows per tile).
    n_tiles = _cdiv(B, block_b)
    if n_tiles == 1 and B >= 128:
        # Force a 2-way batch split so the "parallel" grid axis can engage
        # both TensorCores on v7x.  Tiny batches stay single-step.
        n_tiles = 2
    TB = _round_up(_cdiv(B, n_tiles), 8)
    B_pad = n_tiles * TB
    if B_pad != B:
        x = jnp.pad(x, ((0, B_pad - B), (0, 0)))

    grid = (n_tiles,)

    def resident(arr):
        # Full-array block, same block index every grid step -> DMA'd once,
        # stays VMEM-resident across the batch grid.
        return pl.BlockSpec(arr.shape, lambda i: (0, 0))

    in_specs = [
        pl.BlockSpec((TB, n_obs), lambda i: (i, 0)),   # x: tiled over batch
        resident(prepped["w1"]), resident(prepped["b1"]),
        resident(prepped["w2"]), resident(prepped["b2"]),
        resident(prepped["w3"]), resident(prepped["b3"]),
        resident(prepped["w4"]), resident(prepped["b4"]),
    ]
    out_spec = pl.BlockSpec((TB, a_pad), lambda i: (i, 0))  # lane-dense (128)

    param_bytes = sum(
        int(prepped[k].size) * prepped[k].dtype.itemsize
        for k in ("w1", "b1", "w2", "b2", "w3", "b3", "w4", "b4"))
    flops = 2 * B_pad * (n_obs * _H1 + _H1 * _H2 + _H2 * _H3 + _H3 * a_pad)
    out_itemsize = jnp.dtype(out_dtype).itemsize
    cost = pl.CostEstimate(
        flops=flops,
        transcendentals=0,
        bytes_accessed=(param_bytes + B_pad * n_obs * 4
                        + B_pad * a_pad * out_itemsize),
    )

    out = pl.pallas_call(
        _mlp_kernel,
        out_shape=jax.ShapeDtypeStruct((B_pad, a_pad), out_dtype),
        grid=grid,
        in_specs=in_specs,
        out_specs=out_spec,
        compiler_params=pltpu.CompilerParams(
            dimension_semantics=("parallel",)),
        cost_estimate=cost,
    )(x,
      prepped["w1"], prepped["b1"],
      prepped["w2"], prepped["b2"],
      prepped["w3"], prepped["b3"],
      prepped["w4"], prepped["b4"])

    # NOTE: call this under the consumer's jit so the slice fuses instead of
    # materializing another HBM copy of the padded output.
    return out[:B, :n_actions]


def _reference_forward_f32(x, params):
    # Pure-f32 reference matching the PyTorch module.
    h = jnp.maximum(x @ params["w1"].T + params["b1"], 0.0)
    h = jnp.maximum(h @ params["w2"].T + params["b2"], 0.0)
    h = jnp.maximum(h @ params["w3"].T + params["b3"], 0.0)
    return h @ params["w4"].T + params["b4"]


def _reference_forward_bf16(x, params):
    # Reference mirroring the kernel numerics: bf16 operands, f32 accumulate.
    def lin(a, w, b):
        y = jnp.dot(a.astype(jnp.bfloat16),
                    jnp.asarray(w, jnp.float32).T.astype(jnp.bfloat16),
                    preferred_element_type=jnp.float32)
        return y + jnp.asarray(b, jnp.float32)

    h = jnp.maximum(lin(x, params["w1"], params["b1"]), 0.0)
    h = jnp.maximum(lin(h, params["w2"], params["b2"]), 0.0)
    h = jnp.maximum(lin(h, params["w3"], params["b3"]), 0.0)
    return lin(h, params["w4"], params["b4"])


def _init_params(key, n_observations, n_actions):
    # Deterministic synthetic init (PyTorch-style uniform(-1/sqrt(fan_in), +)).
    dims = [(256, n_observations), (128, 256), (128, 128), (n_actions, 128)]
    params = {}
    for i, (out_f, in_f) in enumerate(dims, start=1):
        key, kw, kb = jax.random.split(key, 3)
        bound = 1.0 / jnp.sqrt(jnp.float32(in_f))
        params[f"w{i}"] = jax.random.uniform(
            kw, (out_f, in_f), jnp.float32, minval=-bound, maxval=bound)
        params[f"b{i}"] = jax.random.uniform(
            kb, (out_f,), jnp.float32, minval=-bound, maxval=bound)
    return params


if __name__ == "__main__":
    key = jax.random.PRNGKey(0)
    n_observations = 32
    n_actions = 8

    key, kp = jax.random.split(key)
    params = _init_params(kp, n_observations, n_actions)
    prepped = prepare_params(params)   # one-time layout prep (not per call)

    # Small-batch path (grid=(1,), batch padded to one sublane tile of 8).
    key, kx = jax.random.split(key)
    x_small = jax.random.normal(kx, (2, n_observations), jnp.float32)
    out_small = jax.block_until_ready(
        spread_deep_network_forward(x_small, prepped))
    assert out_small.shape == (2, n_actions)
    ref_small_bf16 = _reference_forward_bf16(x_small, params)
    ref_small_f32 = _reference_forward_f32(x_small, params)
    assert jnp.allclose(out_small, ref_small_bf16, atol=5e-3, rtol=5e-3), \
        "small-batch mismatch vs bf16-matched reference"
    assert jnp.allclose(out_small, ref_small_f32, atol=1e-1, rtol=1e-1), \
        "small-batch mismatch vs f32 reference"

    # Larger batch exercising the balanced batch grid:
    # B=300 -> n_tiles=2, TB=152, B_pad=304 (only 4 padded rows).
    key, kx = jax.random.split(key)
    x_big = jax.random.normal(kx, (300, n_observations), jnp.float32)
    out_big = jax.block_until_ready(
        spread_deep_network_forward(x_big, prepped))
    assert out_big.shape == (300, n_actions)
    ref_big_bf16 = _reference_forward_bf16(x_big, params)
    ref_big_f32 = _reference_forward_f32(x_big, params)
    assert jnp.allclose(out_big, ref_big_bf16, atol=5e-3, rtol=5e-3), \
        "large-batch mismatch vs bf16-matched reference"
    assert jnp.allclose(out_big, ref_big_f32, atol=1e-1, rtol=1e-1), \
        "large-batch mismatch vs f32 reference"

    print("KERNEL_OK")
</pallas_src>

<mosaic_0001>
module attributes {stable_mosaic.version = 11 : i64} {
  func.func @_mlp_kernel(%arg0: i32, %arg1: memref<8x32xf32, #tpu.memory_space<vmem>>, %arg2: memref<32x256xbf16, #tpu.memory_space<vmem>>, %arg3: memref<1x256xf32, #tpu.memory_space<vmem>>, %arg4: memref<256x128xbf16, #tpu.memory_space<vmem>>, %arg5: memref<1x128xf32, #tpu.memory_space<vmem>>, %arg6: memref<128x128xbf16, #tpu.memory_space<vmem>>, %arg7: memref<1x128xf32, #tpu.memory_space<vmem>>, %arg8: memref<128x128xbf16, #tpu.memory_space<vmem>>, %arg9: memref<1x128xf32, #tpu.memory_space<vmem>>, %arg10: memref<8x128xf32, #tpu.memory_space<vmem>>) attributes {dimension_semantics = [#tpu.dimension_semantics<parallel>], iteration_bounds = array<i64: 1>, scalar_prefetch = 0 : i64, scratch_operands = 0 : i64, tpu.core_type = #tpu.core_type<tc>, window_params = [{transform_indices = @transform_0, window_bounds = array<i64: 8, 32>}, {pipeline_mode = #tpu.pipeline_mode<synchronous>, transform_indices = @transform_1, window_bounds = array<i64: 32, 256>}, {pipeline_mode = #tpu.pipeline_mode<synchronous>, transform_indices = @transform_2, window_bounds = array<i64: 1, 256>}, {pipeline_mode = #tpu.pipeline_mode<synchronous>, transform_indices = @transform_3, window_bounds = array<i64: 256, 128>}, {pipeline_mode = #tpu.pipeline_mode<synchronous>, transform_indices = @transform_4, window_bounds = array<i64: 1, 128>}, {pipeline_mode = #tpu.pipeline_mode<synchronous>, transform_indices = @transform_5, window_bounds = array<i64: 128, 128>}, {pipeline_mode = #tpu.pipeline_mode<synchronous>, transform_indices = @transform_6, window_bounds = array<i64: 1, 128>}, {pipeline_mode = #tpu.pipeline_mode<synchronous>, transform_indices = @transform_7, window_bounds = array<i64: 128, 128>}, {pipeline_mode = #tpu.pipeline_mode<synchronous>, transform_indices = @transform_8, window_bounds = array<i64: 1, 128>}, {transform_indices = @transform_9, window_bounds = array<i64: 8, 128>}]} {
    %c0 = arith.constant 0 : index
    %c0_0 = arith.constant 0 : index
    %0 = vector.load %arg1[%c0, %c0_0] : memref<8x32xf32, #tpu.memory_space<vmem>>, vector<8x32xf32>
    %1 = arith.truncf %0 : vector<8x32xf32> to vector<8x32xbf16>
    %c0_1 = arith.constant 0 : index
    %c0_2 = arith.constant 0 : index
    %2 = vector.load %arg2[%c0_1, %c0_2] : memref<32x256xbf16, #tpu.memory_space<vmem>>, vector<32x256xbf16>
    %cst = arith.constant dense<0.000000e+00> : vector<8x256xf32>
    %3 = tpu.matmul %1, %2, %cst {dimension_numbers = #tpu.dot_dimension_numbers<[1], [0], [0], [1], [0, 0, 1, 1], [], []>} : vector<8x32xbf16>, vector<32x256xbf16>, vector<8x256xf32> -> vector<8x256xf32>
    %c0_3 = arith.constant 0 : index
    %c0_4 = arith.constant 0 : index
    %4 = vector.load %arg3[%c0_3, %c0_4] : memref<1x256xf32, #tpu.memory_space<vmem>>, vector<1x256xf32>
    %5 = vector.broadcast %4 : vector<1x256xf32> to vector<8x256xf32>
    %6 = arith.addf %3, %5 : vector<8x256xf32>
    %cst_5 = arith.constant 0.000000e+00 : f32
    %7 = vector.broadcast %cst_5 : f32 to vector<8x256xf32>
    %8 = arith.maximumf %6, %7 : vector<8x256xf32>
    %9 = arith.truncf %8 : vector<8x256xf32> to vector<8x256xbf16>
    %c0_6 = arith.constant 0 : index
    %c0_7 = arith.constant 0 : index
    %10 = vector.load %arg4[%c0_6, %c0_7] : memref<256x128xbf16, #tpu.memory_space<vmem>>, vector<256x128xbf16>
    %cst_8 = arith.constant dense<0.000000e+00> : vector<8x128xf32>
    %11 = tpu.matmul %9, %10, %cst_8 {dimension_numbers = #tpu.dot_dimension_numbers<[1], [0], [0], [1], [0, 0, 1, 1], [], []>} : vector<8x256xbf16>, vector<256x128xbf16>, vector<8x128xf32> -> vector<8x128xf32>
    %c0_9 = arith.constant 0 : index
    %c0_10 = arith.constant 0 : index
    %12 = vector.load %arg5[%c0_9, %c0_10] : memref<1x128xf32, #tpu.memory_space<vmem>>, vector<1x128xf32>
    %13 = vector.broadcast %12 : vector<1x128xf32> to vector<8x128xf32>
    %14 = arith.addf %11, %13 : vector<8x128xf32>
    %cst_11 = arith.constant 0.000000e+00 : f32
    %15 = vector.broadcast %cst_11 : f32 to vector<8x128xf32>
    %16 = arith.maximumf %14, %15 : vector<8x128xf32>
    %17 = arith.truncf %16 : vector<8x128xf32> to vector<8x128xbf16>
    %c0_12 = arith.constant 0 : index
    %c0_13 = arith.constant 0 : index
    %18 = vector.load %arg6[%c0_12, %c0_13] : memref<128x128xbf16, #tpu.memory_space<vmem>>, vector<128x128xbf16>
    %cst_14 = arith.constant dense<0.000000e+00> : vector<8x128xf32>
    %19 = tpu.matmul %17, %18, %cst_14 {dimension_numbers = #tpu.dot_dimension_numbers<[1], [0], [0], [1], [0, 0, 1, 1], [], []>} : vector<8x128xbf16>, vector<128x128xbf16>, vector<8x128xf32> -> vector<8x128xf32>
    %c0_15 = arith.constant 0 : index
    %c0_16 = arith.constant 0 : index
    %20 = vector.load %arg7[%c0_15, %c0_16] : memref<1x128xf32, #tpu.memory_space<vmem>>, vector<1x128xf32>
    %21 = vector.broadcast %20 : vector<1x128xf32> to vector<8x128xf32>
    %22 = arith.addf %19, %21 : vector<8x128xf32>
    %cst_17 = arith.constant 0.000000e+00 : f32
    %23 = vector.broadcast %cst_17 : f32 to vector<8x128xf32>
    %24 = arith.maximumf %22, %23 : vector<8x128xf32>
    %25 = arith.truncf %24 : vector<8x128xf32> to vector<8x128xbf16>
    %c0_18 = arith.constant 0 : index
    %c0_19 = arith.constant 0 : index
    %26 = vector.load %arg8[%c0_18, %c0_19] : memref<128x128xbf16, #tpu.memory_space<vmem>>, vector<128x128xbf16>
    %cst_20 = arith.constant dense<0.000000e+00> : vector<8x128xf32>
    %27 = tpu.matmul %25, %26, %cst_20 {dimension_numbers = #tpu.dot_dimension_numbers<[1], [0], [0], [1], [0, 0, 1, 1], [], []>} : vector<8x128xbf16>, vector<128x128xbf16>, vector<8x128xf32> -> vector<8x128xf32>
    %c0_21 = arith.constant 0 : index
    %c0_22 = arith.constant 0 : index
    %28 = vector.load %arg9[%c0_21, %c0_22] : memref<1x128xf32, #tpu.memory_space<vmem>>, vector<1x128xf32>
    %29 = vector.broadcast %28 : vector<1x128xf32> to vector<8x128xf32>
    %30 = arith.addf %27, %29 : vector<8x128xf32>
    %c0_23 = arith.constant 0 : index
    %c0_24 = arith.constant 0 : index
    %31 = vector.load %arg10[%c0_23, %c0_24] : memref<8x128xf32, #tpu.memory_space<vmem>>, vector<8x128xf32>
    tpu.vector_store %arg10[%c0_23, %c0_24], %30 {strides = array<i32>} : memref<8x128xf32, #tpu.memory_space<vmem>>, vector<8x128xf32>,
    return
  }
  func.func @transform_0(%arg0: i32) -> (i32, i32) {
    %c0_i32 = arith.constant 0 : i32
    %c0_i32_0 = arith.constant 0 : i32
    return %arg0, %c0_i32 : i32, i32
  }
  func.func @transform_1(%arg0: i32) -> (i32, i32) {
    %c0_i32 = arith.constant 0 : i32
    %c0_i32_0 = arith.constant 0 : i32
    %c0_i32_1 = arith.constant 0 : i32
    return %c0_i32, %c0_i32_0 : i32, i32
  }
  func.func @transform_2(%arg0: i32) -> (i32, i32) {
    %c0_i32 = arith.constant 0 : i32
    %c0_i32_0 = arith.constant 0 : i32
    %c0_i32_1 = arith.constant 0 : i32
    return %c0_i32, %c0_i32_0 : i32, i32
  }
  func.func @transform_3(%arg0: i32) -> (i32, i32) {
    %c0_i32 = arith.constant 0 : i32
    %c0_i32_0 = arith.constant 0 : i32
    %c0_i32_1 = arith.constant 0 : i32
    return %c0_i32, %c0_i32_0 : i32, i32
  }
  func.func @transform_4(%arg0: i32) -> (i32, i32) {
    %c0_i32 = arith.constant 0 : i32
    %c0_i32_0 = arith.constant 0 : i32
    %c0_i32_1 = arith.constant 0 : i32
    return %c0_i32, %c0_i32_0 : i32, i32
  }
  func.func @transform_5(%arg0: i32) -> (i32, i32) {
    %c0_i32 = arith.constant 0 : i32
    %c0_i32_0 = arith.constant 0 : i32
    %c0_i32_1 = arith.constant 0 : i32
    return %c0_i32, %c0_i32_0 : i32, i32
  }
  func.func @transform_6(%arg0: i32) -> (i32, i32) {
    %c0_i32 = arith.constant 0 : i32
    %c0_i32_0 = arith.constant 0 : i32
    %c0_i32_1 = arith.constant 0 : i32
    return %c0_i32, %c0_i32_0 : i32, i32
  }
  func.func @transform_7(%arg0: i32) -> (i32, i32) {
    %c0_i32 = arith.constant 0 : i32
    %c0_i32_0 = arith.constant 0 : i32
    %c0_i32_1 = arith.constant 0 : i32
    return %c0_i32, %c0_i32_0 : i32, i32
  }
  func.func @transform_8(%arg0: i32) -> (i32, i32) {
    %c0_i32 = arith.constant 0 : i32
    %c0_i32_0 = arith.constant 0 : i32
    %c0_i32_1 = arith.constant 0 : i32
    return %c0_i32, %c0_i32_0 : i32, i32
  }
  func.func @transform_9(%arg0: i32) -> (i32, i32) {
    %c0_i32 = arith.constant 0 : i32
    %c0_i32_0 = arith.constant 0 : i32
    return %arg0, %c0_i32 : i32, i32
  }
}

</mosaic_0001>

<llo_original>
// kernel: tpu_custom_call.1
$region0: #{tpu_custom_call.1}
  #allocation0 [shape = 'u32[]', space=smem, size = 0x4, offset = 0x4, fixed_abs, tag = 'smem constant byte address 0x4 - core index']
  #allocation1 [shape = 'u32[144,128]{1,0:T(1,128)}', space=vmem, size = 0x12000, scoped, tag = 'internal scratch']
  %s0 = inlined_call_operand.hbm [shape: f32[8,32], index: 0, kind: input, shape index: {}]
  %s1 = inlined_call_operand.hbm [shape: bf16[32,256], index: 1, kind: input, shape index: {}]
  %s2 = inlined_call_operand.vmem [shape: f32[1,256], index: 2, kind: input, shape index: {}]
  %s3 = inlined_call_operand.hbm [shape: bf16[256,128], index: 3, kind: input, shape index: {}]
  %s4 = inlined_call_operand.vmem [shape: f32[1,128], index: 4, kind: input, shape index: {}]
  %s5 = inlined_call_operand.hbm [shape: bf16[128,128], index: 5, kind: input, shape index: {}]
  %s6 = inlined_call_operand.vmem [shape: f32[1,128], index: 6, kind: input, shape index: {}]
  %s7 = inlined_call_operand.hbm [shape: bf16[128,128], index: 7, kind: input, shape index: {}]
  %s8 = inlined_call_operand.vmem [shape: f32[1,128], index: 8, kind: input, shape index: {}]
  %s9 = inlined_call_operand.hbm [shape: f32[8,128], index: 9, kind: output, shape index: {}]
  %s10 = sld [smem:[#allocation0]]
  $region66: #{tpu_custom_call.1} parent=0
    _
  %s12 = ssub.s32 1, %s10
  %s13 = scalar_select 0, %s12, %s10
  $region1: #{tpu_custom_call.1} parent=0
    #allocation2 [shape = 'u8[4096]{0}', space=vmem, size = 0x1000, scoped, tag = 'input window, operand 0, single buffered']
    #allocation3 [shape = 's32[1]{0}', space=sflag, size = 0x4, scoped, tag = 'scoped memory for tpu_custom_call.1']
    #allocation4 [shape = 's32[1]{0}', space=sflag, size = 0x4, scoped, tag = 'scoped memory for tpu_custom_call.1']
    #allocation5 [shape = 'u8[16384]{0}', space=vmem, size = 0x4000, scoped, tag = 'input window, operand 1, single buffered']
    #allocation6 [shape = 's32[1]{0}', space=sflag, size = 0x4, scoped, tag = 'scoped memory for tpu_custom_call.1']
    #allocation7 [shape = 'u8[65536]{0}', space=vmem, size = 0x10000, scoped, tag = 'input window, operand 3, single buffered']
    #allocation8 [shape = 'u8[32768]{0}', space=vmem, size = 0x8000, scoped, tag = 'input window, operand 5, single buffered']
    #allocation9 [shape = 's32[1]{0}', space=sflag, size = 0x4, scoped, tag = 'scoped memory for tpu_custom_call.1']
    #allocation10 [shape = 'u8[32768]{0}', space=vmem, size = 0x8000, scoped, tag = 'input window, operand 7, single buffered']
    #allocation11 [shape = 'u8[4096]{0}', space=vmem, size = 0x1000, scoped, tag = 'output window, operand 0, single buffered']
    %14 = vsyncpa [#allocation3], 0
    %15 = vsyncpa [#allocation6], 0
    %16 = vsyncpa [#allocation9], 0
    %17 = vsyncpa [#allocation4], 0
    // Predicated region
    $region2: #{tpu_custom_call.1} parent=1 // pred_check
      _
    $region3: #{tpu_custom_call.1} parent=1 // pred_check_branch
      %19 = sbr.rel (0) target = $region5
    $region4: #{tpu_custom_call.1} parent=1 // pred_region
      %s21 = ssub.s32 128, 128
      %22 = vsyncadd [#allocation3], %s21
      %s24 = sshll.u32 [#allocation2], 4
      %s25 = int_to_ptr.vmem [resolvable:$true] %s24
      %27 = dma.hbm_to_vmem [thread:$0]  %s0, 128, %s25, [#allocation3]
    $region5: #{tpu_custom_call.1} parent=1 // pred_fallthru
      _
    // Predicated region
    $region6: #{tpu_custom_call.1} parent=1 // pred_check
      _
    $region7: #{tpu_custom_call.1} parent=1 // pred_check_branch
      %29 = sbr.rel (0) target = $region9
    $region8: #{tpu_custom_call.1} parent=1 // pred_region
      %s31 = ssub.s32 512, 512
      %32 = vsyncadd [#allocation6], %s31
      %s33 = sshll.u32 [#allocation5], 4
      %s34 = int_to_ptr.vmem [resolvable:$true] %s33
      %39 = dma.hbm_to_vmem [thread:$0]  %s1, 512, %s34, [#allocation6], 128, 128, 8
    $region9: #{tpu_custom_call.1} parent=1 // pred_fallthru
      _
    // Predicated region
    $region10: #{tpu_custom_call.1} parent=1 // pred_check
      _
    $region11: #{tpu_custom_call.1} parent=1 // pred_check_branch
      %41 = sbr.rel (0) target = $region13
    $region12: #{tpu_custom_call.1} parent=1 // pred_region
      _
    $region13: #{tpu_custom_call.1} parent=1 // pred_fallthru
      _
    // Predicated region
    $region14: #{tpu_custom_call.1} parent=1 // pred_check
      _
    $region15: #{tpu_custom_call.1} parent=1 // pred_check_branch
      %43 = sbr.rel (0) target = $region17
    $region16: #{tpu_custom_call.1} parent=1 // pred_region
      %s45 = ssub.s32 2048, 2048
      %46 = vsyncadd [#allocation6], %s45
      %s47 = sshll.u32 [#allocation7], 4
      %s48 = int_to_ptr.vmem [resolvable:$true] %s47
      %53 = dma.hbm_to_vmem [thread:$0]  %s3, 2048, %s48, [#allocation6], 64, 64, 4
    $region17: #{tpu_custom_call.1} parent=1 // pred_fallthru
      _
    // Predicated region
    $region18: #{tpu_custom_call.1} parent=1 // pred_check
      _
    $region19: #{tpu_custom_call.1} parent=1 // pred_check_branch
      %55 = sbr.rel (0) target = $region21
    $region20: #{tpu_custom_call.1} parent=1 // pred_region
      _
    $region21: #{tpu_custom_call.1} parent=1 // pred_fallthru
      _
    // Predicated region
    $region22: #{tpu_custom_call.1} parent=1 // pred_check
      _
    $region23: #{tpu_custom_call.1} parent=1 // pred_check_branch
      %57 = sbr.rel (0) target = $region25
    $region24: #{tpu_custom_call.1} parent=1 // pred_region
      %s59 = ssub.s32 1024, 1024
      %60 = vsyncadd [#allocation9], %s59
      %s61 = sshll.u32 [#allocation8], 4
      %s62 = int_to_ptr.vmem [resolvable:$true] %s61
      %67 = dma.hbm_to_vmem [thread:$0]  %s5, 1024, %s62, [#allocation9], 64, 64, 4
    $region25: #{tpu_custom_call.1} parent=1 // pred_fallthru
      _
    // Predicated region
    $region26: #{tpu_custom_call.1} parent=1 // pred_check
      _
    $region27: #{tpu_custom_call.1} parent=1 // pred_check_branch
      %69 = sbr.rel (0) target = $region29
    $region28: #{tpu_custom_call.1} parent=1 // pred_region
      _
    $region29: #{tpu_custom_call.1} parent=1 // pred_fallthru
      _
    // Predicated region
    $region30: #{tpu_custom_call.1} parent=1 // pred_check
      _
    $region31: #{tpu_custom_call.1} parent=1 // pred_check_branch
      %71 = sbr.rel (0) target = $region33
    $region32: #{tpu_custom_call.1} parent=1 // pred_region
      %s73 = ssub.s32 1024, 1024
      %74 = vsyncadd [#allocation9], %s73
      %s75 = sshll.u32 [#allocation10], 4
      %s76 = int_to_ptr.vmem [resolvable:$true] %s75
      %81 = dma.hbm_to_vmem [thread:$0]  %s7, 1024, %s76, [#allocation9], 64, 64, 4
    $region33: #{tpu_custom_call.1} parent=1 // pred_fallthru
      _
    // Predicated region
    $region34: #{tpu_custom_call.1} parent=1 // pred_check
      _
    $region35: #{tpu_custom_call.1} parent=1 // pred_check_branch
      %83 = sbr.rel (0) target = $region37
    $region36: #{tpu_custom_call.1} parent=1 // pred_region
      _
    $region37: #{tpu_custom_call.1} parent=1 // pred_fallthru
      _
    // Predicated region
    $region38: #{tpu_custom_call.1} parent=1 // pred_check
      _
    $region39: #{tpu_custom_call.1} parent=1 // pred_check_branch
      %85 = sbr.rel (0) target = $region41
    $region40: #{tpu_custom_call.1} parent=1 // pred_region
      %86 = dma.done [#allocation3], 128
    $region41: #{tpu_custom_call.1} parent=1 // pred_fallthru
      _
    // Predicated region
    $region42: #{tpu_custom_call.1} parent=1 // pred_check
      _
    $region43: #{tpu_custom_call.1} parent=1 // pred_check_branch
      %88 = sbr.rel (0) target = $region45
    $region44: #{tpu_custom_call.1} parent=1 // pred_region
      %89 = dma.done [#allocation6], 512
    $region45: #{tpu_custom_call.1} parent=1 // pred_fallthru
      _
    // Predicated region
    $region46: #{tpu_custom_call.1} parent=1 // pred_check
      _
    $region47: #{tpu_custom_call.1} parent=1 // pred_check_branch
      %91 = sbr.rel (0) target = $region49
    $region48: #{tpu_custom_call.1} parent=1 // pred_region
      %92 = dma.done [#allocation6], 2048
    $region49: #{tpu_custom_call.1} parent=1 // pred_fallthru
      _
    // Predicated region
    $region50: #{tpu_custom_call.1} parent=1 // pred_check
      _
    $region51: #{tpu_custom_call.1} parent=1 // pred_check_branch
      %94 = sbr.rel (0) target = $region53
    $region52: #{tpu_custom_call.1} parent=1 // pred_region
      %95 = dma.done [#allocation9], 1024
    $region53: #{tpu_custom_call.1} parent=1 // pred_fallthru
      _
    // Predicated region
    $region54: #{tpu_custom_call.1} parent=1 // pred_check
      _
    $region55: #{tpu_custom_call.1} parent=1 // pred_check_branch
      %97 = sbr.rel (0) target = $region57
    $region56: #{tpu_custom_call.1} parent=1 // pred_region
      %98 = dma.done [#allocation9], 1024
    $region57: #{tpu_custom_call.1} parent=1 // pred_fallthru
      _
    %v100 = vld [vmem:[#allocation2] sm:$0xff]
    %v101 = vpack.c.bf16 %v100, %v100
    %v102 = vld [vmem:[#allocation5] sm:$0xff]
    %v103 = vld [vmem:[#allocation5 + $0x8] sm:$0xff]
    %v104 = vld [vmem:[#allocation5 + $0x10] sm:$0xff]
    %v105 = vld [vmem:[#allocation5 + $0x18] sm:$0xff]
    %v106 = vld [vmem:[%s2] sm:$0x3]
    %v108 = vlaneseq
    %v109 = vshrl.u32 %v108, 7
    %v110 = vsub.s32 0, %v109
    %v111 = vrot.slane %v106, %v110
    %v112 = vlaneseq
    %v113 = vshrl.u32 %v112, 7
    %v114 = vsub.s32 1, %v113
    %v115 = vrot.slane %v106, %v114
    %v122 = vunpack.c.l.b16 %v102
    %v123 = vunpack.c.h.b16 %v102
    %v124 = vunpack.c.l.b16 %v103
    %v125 = vunpack.c.h.b16 %v103
    %v126 = vunpack.c.l.b16 %v104
    %v127 = vunpack.c.h.b16 %v104
    %v128 = vunpack.c.l.b16 %v105
    %v129 = vunpack.c.h.b16 %v105
    %v130 = vpack.c.b16 %v124, %v122
    %v131 = vpack.c.b16 %v125, %v123
    %v132 = vpack.c.b16 %v128, %v126
    %v133 = vpack.c.b16 %v129, %v127
    %vm138 = vcmask 261120
    %v140 = vsel %vm138, %v101, 0
    %142 = vmatprep.subr.bf16.mxu0 0
    %143 = vmatpush1.bf16.msra.mxu0 0
    %144 = vmatprep.subr.bf16.mxu0 0
    %145 = vmatpush1.bf16.msra.mxu0 0
    %146 = vmatprep.subr.bf16.mxu0 0
    %147 = vmatpush1.bf16.msra.mxu0 0
    %148 = vmatprep.subr.bf16.mxu0 0
    %149 = vmatpush1.bf16.msra.mxu0 0
    %150 = vmatprep.subr.bf16.mxu0 0
    %151 = vmatpush1.bf16.msra.mxu0 0
    %152 = vmatprep.subr.bf16.mxu0 0
    %153 = vmatpush1.bf16.msra.mxu0 0
    %154 = vmatprep.subr.bf16.mxu0 %v133
    %155 = vmatpush1.bf16.msra.mxu0 %v132
    %156 = vmatprep.subr.bf16.mxu0 %v131
    %157 = vmatpush1.bf16.msra.mxu0 %v130
    %158 = vmatprep.subr.bf16.mxu0 0
    %159 = vmatpush2.bf16.msra.mxu0 0
    %160 = vmatprep.subr.bf16.mxu0 0
    %161 = vmatpush2.bf16.msra.mxu0 0
    %162 = vmatprep.subr.bf16.mxu0 0
    %163 = vmatpush2.bf16.msra.mxu0 0
    %164 = vmatprep.subr.bf16.mxu0 0
    %165 = vmatpush2.bf16.msra.mxu0 0
    %166 = vmatprep.subr.bf16.mxu0 0
    %167 = vmatpush2.bf16.msra.mxu0 0
    %168 = vmatprep.subr.bf16.mxu0 0
    %169 = vmatpush2.bf16.msra.mxu0 0
    %170 = vmatprep.subr.bf16.mxu0 0
    %171 = vmatpush2.bf16.msra.mxu0 0
    %172 = vmatprep.subr.bf16.mxu0 0
    %173 = vmatpush2.bf16.msra.mxu0 0
    %174 = vmatprep.mubr.bf16.mxu0 0
    %175 = vmatmul.mubr.bf16.gmra.mxu0 %v140
    %v176 = vpop.f32.mrf.mxu0
    %v177 = vadd.f32 %v111, %v176
    %v178 = vpop.f32.mrf.mxu0
    %v179 = vadd.f32 %v115, %v178
    %v180 = vpop.f32.mrf.mxu0
    %v181 = vpop.f32.mrf.mxu0
    %182 = vdwg.mxu0
    %v183 = vmax.f32 %v177, 0.0
    %v184 = vmax.f32 %v179, 0.0
    %v185 = vpack.c.bf16 %v183, %v183
    %v186 = vpack.c.bf16 %v184, %v184
    %v187 = vld [vmem:[#allocation7] sm:$0xf]
    %v188 = vld [vmem:[#allocation7 + $0x4] sm:$0xf]
    %v189 = vld [vmem:[#allocation7 + $0x8] sm:$0xf]
    %v190 = vld [vmem:[#allocation7 + $0xc] sm:$0xf]
    %v191 = vld [vmem:[#allocation7 + $0x10] sm:$0xf]
    %v192 = vld [vmem:[#allocation7 + $0x14] sm:$0xf]
    %v193 = vld [vmem:[#allocation7 + $0x18] sm:$0xf]
    %v194 = vld [vmem:[#allocation7 + $0x1c] sm:$0xf]
    %v195 = vld [vmem:[#allocation7 + $0x20] sm:$0xf]
    %v196 = vld [vmem:[#allocation7 + $0x24] sm:$0xf]
    %v197 = vld [vmem:[#allocation7 + $0x28] sm:$0xf]
    %v198 = vld [vmem:[#allocation7 + $0x2c] sm:$0xf]
    %v199 = vld [vmem:[#allocation7 + $0x30] sm:$0xf]
    %v200 = vld [vmem:[#allocation7 + $0x34] sm:$0xf]
    %v201 = vld [vmem:[#allocation7 + $0x38] sm:$0xf]
    %v202 = vld [vmem:[#allocation7 + $0x3c] sm:$0xf]
    %v203 = vld [vmem:[#allocation7 + $0x40] sm:$0xf]
    %v204 = vld [vmem:[#allocation7 + $0x44] sm:$0xf]
    %v205 = vld [vmem:[#allocation7 + $0x48] sm:$0xf]
    %v206 = vld [vmem:[#allocation7 + $0x4c] sm:$0xf]
    %v207 = vld [vmem:[#allocation7 + $0x50] sm:$0xf]
    %v208 = vld [vmem:[#allocation7 + $0x54] sm:$0xf]
    %v209 = vld [vmem:[#allocation7 + $0x58] sm:$0xf]
    %v210 = vld [vmem:[#allocation7 + $0x5c] sm:$0xf]
    %v211 = vld [vmem:[#allocation7 + $0x60] sm:$0xf]
    %v212 = vld [vmem:[#allocation7 + $0x64] sm:$0xf]
    %v213 = vld [vmem:[#allocation7 + $0x68] sm:$0xf]
    %v214 = vld [vmem:[#allocation7 + $0x6c] sm:$0xf]
    %v215 = vld [vmem:[#allocation7 + $0x70] sm:$0xf]
    %v216 = vld [vmem:[#allocation7 + $0x74] sm:$0xf]
    %v217 = vld [vmem:[#allocation7 + $0x78] sm:$0xf]
    %v218 = vld [vmem:[#allocation7 + $0x7c] sm:$0xf]
    %v219 = vld [vmem:[%s4] sm:$0x1]
    %v221 = vlaneseq
    %v222 = vshrl.u32 %v221, 7
    %v223 = vsub.s32 0, %v222
    %v224 = vrot.slane %v219, %v223
    %v258 = vunpack.c.l.b16 %v187
    %v259 = vunpack.c.l.b16 %v188
    %v260 = vunpack.c.l.b16 %v189
    %v261 = vunpack.c.l.b16 %v190
    %v262 = vunpack.c.l.b16 %v191
    %v263 = vunpack.c.l.b16 %v192
    %v264 = vunpack.c.l.b16 %v193
    %v265 = vunpack.c.l.b16 %v194
    %v266 = vunpack.c.l.b16 %v195
    %v267 = vunpack.c.l.b16 %v196
    %v268 = vunpack.c.l.b16 %v197
    %v269 = vunpack.c.l.b16 %v198
    %v270 = vunpack.c.l.b16 %v199
    %v271 = vunpack.c.l.b16 %v200
    %v272 = vunpack.c.l.b16 %v201
    %v273 = vunpack.c.l.b16 %v202
    %v274 = vunpack.c.l.b16 %v203
    %v275 = vunpack.c.l.b16 %v204
    %v276 = vunpack.c.l.b16 %v205
    %v277 = vunpack.c.l.b16 %v206
    %v278 = vunpack.c.l.b16 %v207
    %v279 = vunpack.c.l.b16 %v208
    %v280 = vunpack.c.l.b16 %v209
    %v281 = vunpack.c.l.b16 %v210
    %v282 = vunpack.c.l.b16 %v211
    %v283 = vunpack.c.l.b16 %v212
    %v284 = vunpack.c.l.b16 %v213
    %v285 = vunpack.c.l.b16 %v214
    %v286 = vunpack.c.l.b16 %v215
    %v287 = vunpack.c.l.b16 %v216
    %v288 = vunpack.c.l.b16 %v217
    %v289 = vunpack.c.l.b16 %v218
    %v290 = vpack.c.b16 %v259, %v258
    %v291 = vpack.c.b16 %v261, %v260
    %v292 = vpack.c.b16 %v263, %v262
    %v293 = vpack.c.b16 %v265, %v264
    %v294 = vpack.c.b16 %v267, %v266
    %v295 = vpack.c.b16 %v269, %v268
    %v296 = vpack.c.b16 %v271, %v270
    %v297 = vpack.c.b16 %v273, %v272
    %v298 = vpack.c.b16 %v275, %v274
    %v299 = vpack.c.b16 %v277, %v276
    %v300 = vpack.c.b16 %v279, %v278
    %v301 = vpack.c.b16 %v281, %v280
    %v302 = vpack.c.b16 %v283, %v282
    %v303 = vpack.c.b16 %v285, %v284
    %v304 = vpack.c.b16 %v287, %v286
    %v305 = vpack.c.b16 %v289, %v288
    %322 = vmatprep.subr.bf16.mxu0 0
    %323 = vmatpush1.bf16.msra.mxu0 %v297
    %324 = vmatprep.subr.bf16.mxu0 0
    %325 = vmatpush1.bf16.msra.mxu0 %v296
    %326 = vmatprep.subr.bf16.mxu0 0
    %327 = vmatpush1.bf16.msra.mxu0 %v295
    %328 = vmatprep.subr.bf16.mxu0 0
    %329 = vmatpush1.bf16.msra.mxu0 %v294
    %330 = vmatprep.subr.bf16.mxu0 0
    %331 = vmatpush1.bf16.msra.mxu0 %v293
    %332 = vmatprep.subr.bf16.mxu0 0
    %333 = vmatpush1.bf16.msra.mxu0 %v292
    %334 = vmatprep.subr.bf16.mxu0 0
    %335 = vmatpush1.bf16.msra.mxu0 %v291
    %336 = vmatprep.subr.bf16.mxu0 0
    %337 = vmatpush1.bf16.msra.mxu0 %v290
    %338 = vmatprep.subr.bf16.mxu0 0
    %339 = vmatpush2.bf16.msra.mxu0 %v305
    %340 = vmatprep.subr.bf16.mxu0 0
    %341 = vmatpush2.bf16.msra.mxu0 %v304
    %342 = vmatprep.subr.bf16.mxu0 0
    %343 = vmatpush2.bf16.msra.mxu0 %v303
    %344 = vmatprep.subr.bf16.mxu0 0
    %345 = vmatpush2.bf16.msra.mxu0 %v302
    %346 = vmatprep.subr.bf16.mxu0 0
    %347 = vmatpush2.bf16.msra.mxu0 %v301
    %348 = vmatprep.subr.bf16.mxu0 0
    %349 = vmatpush2.bf16.msra.mxu0 %v300
    %350 = vmatprep.subr.bf16.mxu0 0
    %351 = vmatpush2.bf16.msra.mxu0 %v299
    %352 = vmatprep.subr.bf16.mxu0 0
    %353 = vmatpush2.bf16.msra.mxu0 %v298
    %354 = vmatprep.mubr.bf16.mxu0 %v186
    %355 = vmatmul.mubr.bf16.gmra.mxu0 %v185
    %v356 = vpop.f32.mrf.mxu0
    %v357 = vadd.f32 %v224, %v356
    %v358 = vpop.f32.mrf.mxu0
    %v359 = vpop.f32.mrf.mxu0
    %v360 = vpop.f32.mrf.mxu0
    %361 = vdwg.mxu0
    %v362 = vmax.f32 %v357, 0.0
    %v363 = vpack.c.bf16 %v362, %v362
    %v364 = vld [vmem:[#allocation8] sm:$0xf]
    %v365 = vld [vmem:[#allocation8 + $0x4] sm:$0xf]
    %v366 = vld [vmem:[#allocation8 + $0x8] sm:$0xf]
    %v367 = vld [vmem:[#allocation8 + $0xc] sm:$0xf]
    %v368 = vld [vmem:[#allocation8 + $0x10] sm:$0xf]
    %v369 = vld [vmem:[#allocation8 + $0x14] sm:$0xf]
    %v370 = vld [vmem:[#allocation8 + $0x18] sm:$0xf]
    %v371 = vld [vmem:[#allocation8 + $0x1c] sm:$0xf]
    %v372 = vld [vmem:[#allocation8 + $0x20] sm:$0xf]
    %v373 = vld [vmem:[#allocation8 + $0x24] sm:$0xf]
    %v374 = vld [vmem:[#allocation8 + $0x28] sm:$0xf]
    %v375 = vld [vmem:[#allocation8 + $0x2c] sm:$0xf]
    %v376 = vld [vmem:[#allocation8 + $0x30] sm:$0xf]
    %v377 = vld [vmem:[#allocation8 + $0x34] sm:$0xf]
    %v378 = vld [vmem:[#allocation8 + $0x38] sm:$0xf]
    %v379 = vld [vmem:[#allocation8 + $0x3c] sm:$0xf]
    %v380 = vld [vmem:[%s6] sm:$0x1]
    %v382 = vlaneseq
    %v383 = vshrl.u32 %v382, 7
    %v384 = vsub.s32 0, %v383
    %v385 = vrot.slane %v380, %v384
    %v403 = vunpack.c.l.b16 %v364
    %v404 = vunpack.c.l.b16 %v365
    %v405 = vunpack.c.l.b16 %v366
    %v406 = vunpack.c.l.b16 %v367
    %v407 = vunpack.c.l.b16 %v368
    %v408 = vunpack.c.l.b16 %v369
    %v409 = vunpack.c.l.b16 %v370
    %v410 = vunpack.c.l.b16 %v371
    %v411 = vunpack.c.l.b16 %v372
    %v412 = vunpack.c.l.b16 %v373
    %v413 = vunpack.c.l.b16 %v374
    %v414 = vunpack.c.l.b16 %v375
    %v415 = vunpack.c.l.b16 %v376
    %v416 = vunpack.c.l.b16 %v377
    %v417 = vunpack.c.l.b16 %v378
    %v418 = vunpack.c.l.b16 %v379
    %v419 = vpack.c.b16 %v404, %v403
    %v420 = vpack.c.b16 %v406, %v405
    %v421 = vpack.c.b16 %v408, %v407
    %v422 = vpack.c.b16 %v410, %v409
    %v423 = vpack.c.b16 %v412, %v411
    %v424 = vpack.c.b16 %v414, %v413
    %v425 = vpack.c.b16 %v416, %v415
    %v426 = vpack.c.b16 %v418, %v417
    %435 = vmatprep.subr.bf16.mxu0 0
    %436 = vmatpush1.bf16.msra.mxu0 %v426
    %437 = vmatprep.subr.bf16.mxu0 0
    %438 = vmatpush1.bf16.msra.mxu0 %v425
    %439 = vmatprep.subr.bf16.mxu0 0
    %440 = vmatpush1.bf16.msra.mxu0 %v424
    %441 = vmatprep.subr.bf16.mxu0 0
    %442 = vmatpush1.bf16.msra.mxu0 %v423
    %443 = vmatprep.subr.bf16.mxu0 0
    %444 = vmatpush1.bf16.msra.mxu0 %v422
    %445 = vmatprep.subr.bf16.mxu0 0
    %446 = vmatpush1.bf16.msra.mxu0 %v421
    %447 = vmatprep.subr.bf16.mxu0 0
    %448 = vmatpush1.bf16.msra.mxu0 %v420
    %449 = vmatprep.subr.bf16.mxu0 0
    %450 = vmatpush1.bf16.msra.mxu0 %v419
    %451 = vmatprep.subr.bf16.mxu0 0
    %452 = vmatpush2.bf16.msra.mxu0 0
    %453 = vmatprep.subr.bf16.mxu0 0
    %454 = vmatpush2.bf16.msra.mxu0 0
    %455 = vmatprep.subr.bf16.mxu0 0
    %456 = vmatpush2.bf16.msra.mxu0 0
    %457 = vmatprep.subr.bf16.mxu0 0
    %458 = vmatpush2.bf16.msra.mxu0 0
    %459 = vmatprep.subr.bf16.mxu0 0
    %460 = vmatpush2.bf16.msra.mxu0 0
    %461 = vmatprep.subr.bf16.mxu0 0
    %462 = vmatpush2.bf16.msra.mxu0 0
    %463 = vmatprep.subr.bf16.mxu0 0
    %464 = vmatpush2.bf16.msra.mxu0 0
    %465 = vmatprep.subr.bf16.mxu0 0
    %466 = vmatpush2.bf16.msra.mxu0 0
    %467 = vmatprep.mubr.bf16.mxu0 0
    %468 = vmatmul.mubr.bf16.gmra.mxu0 %v363
    %v469 = vpop.f32.mrf.mxu0
    %v470 = vadd.f32 %v385, %v469
    %v471 = vpop.f32.mrf.mxu0
    %v472 = vpop.f32.mrf.mxu0
    %v473 = vpop.f32.mrf.mxu0
    %474 = vdwg.mxu0
    %v475 = vmax.f32 %v470, 0.0
    %v476 = vpack.c.bf16 %v475, %v475
    %v477 = vld [vmem:[#allocation10] sm:$0xf]
    %v478 = vld [vmem:[#allocation10 + $0x4] sm:$0xf]
    %v479 = vld [vmem:[#allocation10 + $0x8] sm:$0xf]
    %v480 = vld [vmem:[#allocation10 + $0xc] sm:$0xf]
    %v481 = vld [vmem:[#allocation10 + $0x10] sm:$0xf]
    %v482 = vld [vmem:[#allocation10 + $0x14] sm:$0xf]
    %v483 = vld [vmem:[#allocation10 + $0x18] sm:$0xf]
    %v484 = vld [vmem:[#allocation10 + $0x1c] sm:$0xf]
    %v485 = vld [vmem:[#allocation10 + $0x20] sm:$0xf]
    %v486 = vld [vmem:[#allocation10 + $0x24] sm:$0xf]
    %v487 = vld [vmem:[#allocation10 + $0x28] sm:$0xf]
    %v488 = vld [vmem:[#allocation10 + $0x2c] sm:$0xf]
    %v489 = vld [vmem:[#allocation10 + $0x30] sm:$0xf]
    %v490 = vld [vmem:[#allocation10 + $0x34] sm:$0xf]
    %v491 = vld [vmem:[#allocation10 + $0x38] sm:$0xf]
    %v492 = vld [vmem:[#allocation10 + $0x3c] sm:$0xf]
    %v493 = vld [vmem:[%s8] sm:$0x1]
    %v495 = vlaneseq
    %v496 = vshrl.u32 %v495, 7
    %v497 = vsub.s32 0, %v496
    %v498 = vrot.slane %v493, %v497
    %v516 = vunpack.c.l.b16 %v477
    %v517 = vunpack.c.l.b16 %v478
    %v518 = vunpack.c.l.b16 %v479
    %v519 = vunpack.c.l.b16 %v480
    %v520 = vunpack.c.l.b16 %v481
    %v521 = vunpack.c.l.b16 %v482
    %v522 = vunpack.c.l.b16 %v483
    %v523 = vunpack.c.l.b16 %v484
    %v524 = vunpack.c.l.b16 %v485
    %v525 = vunpack.c.l.b16 %v486
    %v526 = vunpack.c.l.b16 %v487
    %v527 = vunpack.c.l.b16 %v488
    %v528 = vunpack.c.l.b16 %v489
    %v529 = vunpack.c.l.b16 %v490
    %v530 = vunpack.c.l.b16 %v491
    %v531 = vunpack.c.l.b16 %v492
    %v532 = vpack.c.b16 %v517, %v516
    %v533 = vpack.c.b16 %v519, %v518
    %v534 = vpack.c.b16 %v521, %v520
    %v535 = vpack.c.b16 %v523, %v522
    %v536 = vpack.c.b16 %v525, %v524
    %v537 = vpack.c.b16 %v527, %v526
    %v538 = vpack.c.b16 %v529, %v528
    %v539 = vpack.c.b16 %v531, %v530
    %548 = vmatprep.subr.bf16.mxu0 0
    %549 = vmatpush1.bf16.msra.mxu0 %v539
    %550 = vmatprep.subr.bf16.mxu0 0
    %551 = vmatpush1.bf16.msra.mxu0 %v538
    %552 = vmatprep.subr.bf16.mxu0 0
    %553 = vmatpush1.bf16.msra.mxu0 %v537
    %554 = vmatprep.subr.bf16.mxu0 0
    %555 = vmatpush1.bf16.msra.mxu0 %v536
    %556 = vmatprep.subr.bf16.mxu0 0
    %557 = vmatpush1.bf16.msra.mxu0 %v535
    %558 = vmatprep.subr.bf16.mxu0 0
    %559 = vmatpush1.bf16.msra.mxu0 %v534
    %560 = vmatprep.subr.bf16.mxu0 0
    %561 = vmatpush1.bf16.msra.mxu0 %v533
    %562 = vmatprep.subr.bf16.mxu0 0
    %563 = vmatpush1.bf16.msra.mxu0 %v532
    %564 = vmatprep.subr.bf16.mxu0 0
    %565 = vmatpush2.bf16.msra.mxu0 0
    %566 = vmatprep.subr.bf16.mxu0 0
    %567 = vmatpush2.bf16.msra.mxu0 0
    %568 = vmatprep.subr.bf16.mxu0 0
    %569 = vmatpush2.bf16.msra.mxu0 0
    %570 = vmatprep.subr.bf16.mxu0 0
    %571 = vmatpush2.bf16.msra.mxu0 0
    %572 = vmatprep.subr.bf16.mxu0 0
    %573 = vmatpush2.bf16.msra.mxu0 0
    %574 = vmatprep.subr.bf16.mxu0 0
    %575 = vmatpush2.bf16.msra.mxu0 0
    %576 = vmatprep.subr.bf16.mxu0 0
    %577 = vmatpush2.bf16.msra.mxu0 0
    %578 = vmatprep.subr.bf16.mxu0 0
    %579 = vmatpush2.bf16.msra.mxu0 0
    %580 = vmatprep.mubr.bf16.mxu0 0
    %581 = vmatmul.mubr.bf16.gmra.mxu0 %v476
    %v582 = vpop.f32.mrf.mxu0
    %v583 = vadd.f32 %v498, %v582
    %v584 = vpop.f32.mrf.mxu0
    %v585 = vpop.f32.mrf.mxu0
    %v586 = vpop.f32.mrf.mxu0
    %587 = vdwg.mxu0
    %588 = vst [vmem:[#allocation11] sm:$0xff] %v583
    // Predicated region
    $region58: #{tpu_custom_call.1} parent=1 // pred_check
      _
    $region59: #{tpu_custom_call.1} parent=1 // pred_check_branch
      %590 = sbr.rel (0) target = $region61
    $region60: #{tpu_custom_call.1} parent=1 // pred_region
      %s592 = ssub.s32 128, 128
      %593 = vsyncadd [#allocation4], %s592
      %s595 = sshll.u32 [#allocation11], 4
      %s596 = int_to_ptr.vmem [resolvable:$true] %s595
      %598 = dma.vmem_to_hbm [thread:$0]  %s596, 128, %s9, [#allocation4]
    $region61: #{tpu_custom_call.1} parent=1 // pred_fallthru
      _
    // Predicated region
    $region62: #{tpu_custom_call.1} parent=1 // pred_check
      _
    $region63: #{tpu_custom_call.1} parent=1 // pred_check_branch
      %600 = sbr.rel (0) target = $region65
    $region64: #{tpu_custom_call.1} parent=1 // pred_region
      %601 = dma.done [#allocation4], 128
    $region65: #{tpu_custom_call.1} parent=1 // pred_fallthru
      _
    %602 = vsyncpa [#allocation3], 1
    %603 = vsyncpa [#allocation6], 1
    %604 = vsyncpa [#allocation9], 1
    %605 = vsyncpa [#allocation4], 1

</llo_original>
